<compile_context>
chip_gen: v6e
topology: v6e:2x2x1
jax: 0.10.0
libtpu: 0.0.40
codegen_flags: <defaults>
</compile_context>

<pallas_src>
import functools

import jax
import jax.numpy as jnp
from jax import lax
from jax.experimental import pallas as pl
from jax.experimental.pallas import tpu as pltpu


def _round_up(n: int, m: int) -> int:
    return ((n + m - 1) // m) * m


# ---------------------------------------------------------------------------
# One-time data preparation (hoisted out of the hot path)
# ---------------------------------------------------------------------------

def prepare_rnn_params(weight_ih, weight_hh, bias, *, lane=128, param_dtype=None):
    """Pack the RNNCell parameters into the kernel layout, exactly once.

      w_packed: (I_pad + H_pad, H_pad); rows [0:I]             = W_ih.T
                                        rows [I_pad:I_pad + H] = W_hh.T
      b_packed: (1, H_pad)  (kept f32 — added to the f32 accumulator)
      dims:     (I, H, I_pad, H_pad) static python ints.
    """
    H, I = weight_ih.shape
    I_pad = _round_up(int(I), lane)
    H_pad = _round_up(int(H), lane)
    w_dtype = param_dtype if param_dtype is not None else weight_ih.dtype
    w = jnp.zeros((I_pad + H_pad, H_pad), dtype=w_dtype)
    w = w.at[:I, :H].set(weight_ih.T.astype(w_dtype))
    w = w.at[I_pad:I_pad + H, :H].set(weight_hh.T.astype(w_dtype))
    b = jnp.zeros((1, H_pad), dtype=jnp.float32)
    b = b.at[0, :H].set(bias.astype(jnp.float32))
    return w, b, (int(I), int(H), I_pad, H_pad)


def prepare_rnn_inputs(x_seq, h0, dims, *, time_chunk=8, sublane=8):
    """Zero-pad the (T, B, I) sequence and h0 ONCE, at data-prep time.

    Returns (x_pad, h0_pad, meta) with x_pad: (T_pad, B_pad, I_pad) and
    h0_pad: (B_pad, H_pad); T_pad is a multiple of the per-grid-step time
    chunk TT.  Padded trailing timesteps only run after the real ones, so
    they cannot contaminate real outputs (they are sliced off afterwards).
    """
    I, H, I_pad, H_pad = dims
    T, B = int(x_seq.shape[0]), int(x_seq.shape[1])
    TT = max(1, min(int(time_chunk), T))
    T_pad = _round_up(T, TT)
    B_pad = _round_up(B, sublane)
    x_pad = jnp.zeros((T_pad, B_pad, I_pad), x_seq.dtype).at[:T, :B, :I].set(x_seq)
    h0_pad = jnp.zeros((B_pad, H_pad), jnp.float32).at[:B, :H].set(
        h0.astype(jnp.float32))
    meta = {"T": T, "B": B, "B_pad": B_pad, "TT": TT, "T_pad": T_pad}
    return x_pad, h0_pad, meta


# ---------------------------------------------------------------------------
# Kernel
# ---------------------------------------------------------------------------

def _rnn_seq_kernel(x_ref, h0_ref, w_ref, b_ref, out_ref, xh_ref, *, tt, i_pad):
    """grid = (T_pad // TT,), sequential recurrence over time.

    x_ref  : (TT, B_pad, I_pad)  streamed, one time-chunk per grid step
    h0_ref : (B_pad, H_pad)      resident (constant index_map)
    w_ref  : (K_pad, H_pad)      resident packed [W_ih.T ; W_hh.T]
    b_ref  : (1, H_pad)          resident
    out_ref: (TT, B_pad, H_pad)
    xh_ref : (B_pad, K_pad) f32 VMEM scratch = [x_t | h_{t-1}]; it persists
             across grid steps (carries the hidden state), so there is no
             per-step concatenate and no separate h buffer.
    """
    @pl.when(pl.program_id(0) == 0)
    def _():
        xh_ref[:, i_pad:] = h0_ref[...].astype(jnp.float32)

    def step(i, carry):
        # x_t into the left lanes of the fused operand (lane-aligned store).
        xh_ref[:, :i_pad] = x_ref[i].astype(jnp.float32)
        # One fused MXU matmul: [x_t | h_{t-1}] @ [W_ih.T ; W_hh.T].
        acc = jnp.dot(xh_ref[...].astype(w_ref.dtype), w_ref[...],
                      preferred_element_type=jnp.float32)
        h_new = jnp.tanh(acc + b_ref[...])
        # h_t written in place into the right lanes -> next step's operand.
        xh_ref[:, i_pad:] = h_new
        out_ref[i] = h_new.astype(out_ref.dtype)
        return carry

    # TT unrolled steps per grid step amortize the per-grid-step overhead.
    lax.fori_loop(0, tt, step, 0, unroll=True)
    # TODO(synk): for tiny B_pad, holding W in MXU staging registers
    # (pltpu.matmul_push_rhs once + matmul_acc_lhs/matmul_pop per step) would
    # remove the per-step weight re-push; omitted to keep the kernel portable.


# ---------------------------------------------------------------------------
# Wrappers
# ---------------------------------------------------------------------------

def rnn_forward_sequence(x_pad, h0_pad, w_packed, b_packed, dims, meta, *,
                         vmem_limit_bytes=None):
    """Run the whole padded sequence in ONE pallas_call; returns (T, B, H)."""
    I, H, I_pad, H_pad = dims
    T, B = meta["T"], meta["B"]
    B_pad, TT, T_pad = meta["B_pad"], meta["TT"], meta["T_pad"]
    K_pad = I_pad + H_pad

    kernel = functools.partial(_rnn_seq_kernel, tt=TT, i_pad=I_pad)
    out = pl.pallas_call(
        kernel,
        out_shape=jax.ShapeDtypeStruct((T_pad, B_pad, H_pad), x_pad.dtype),
        grid=(T_pad // TT,),
        in_specs=[
            pl.BlockSpec((TT, B_pad, I_pad), lambda t: (t, 0, 0)),  # x streams
            pl.BlockSpec((B_pad, H_pad), lambda t: (0, 0)),         # h0 resident
            pl.BlockSpec((K_pad, H_pad), lambda t: (0, 0)),         # W resident
            pl.BlockSpec((1, H_pad), lambda t: (0, 0)),             # b resident
        ],
        out_specs=pl.BlockSpec((TT, B_pad, H_pad), lambda t: (t, 0, 0)),
        scratch_shapes=[pltpu.VMEM((B_pad, K_pad), jnp.float32)],
        compiler_params=pltpu.CompilerParams(
            dimension_semantics=("arbitrary",),   # serial recurrence in t
            vmem_limit_bytes=vmem_limit_bytes,    # raise for large H (prod)
        ),
    )(x_pad, h0_pad, w_packed, b_packed)
    return out[:T, :B, :H]


def rnn_cell_forward(x, h_prev, w_packed, b_packed, dims):
    """Single RNNCell.forward step: h = tanh(x @ W_ih.T + h_prev @ W_hh.T + b).

    Routed through the sequence kernel with T = TT = 1.  For a Python-level
    timestep loop, prefer prepare_rnn_inputs + rnn_forward_sequence once for
    the whole sequence instead of looping over this function.
    """
    x_pad, h0_pad, meta = prepare_rnn_inputs(x[None], h_prev, dims, time_chunk=1)
    hs = rnn_forward_sequence(x_pad, h0_pad, w_packed, b_packed, dims, meta)
    return hs[0]


# ---------------------------------------------------------------------------
# References & demo
# ---------------------------------------------------------------------------

def _reference_cell(x, h_prev, weight_ih, weight_hh, bias):
    return jnp.tanh(x @ weight_ih.T + h_prev @ weight_hh.T + bias)


def _reference_sequence(x_seq, h0, weight_ih, weight_hh, bias):
    def step(h, x):
        h = jnp.tanh(x @ weight_ih.T + h @ weight_hh.T + bias)
        return h, h
    _, hs = lax.scan(step, h0, x_seq)
    return hs


if __name__ == "__main__":
    batch, input_size, hidden_size, seq_len = 2, 16, 32, 8

    key = jax.random.PRNGKey(0)
    k_x, k_h, k_wih, k_whh, k_seq = jax.random.split(key, 5)

    x = jax.random.normal(k_x, (batch, input_size), dtype=jnp.float32)
    h_prev = jax.random.normal(k_h, (batch, hidden_size), dtype=jnp.float32)
    x_seq = jax.random.normal(k_seq, (seq_len, batch, input_size),
                              dtype=jnp.float32)

    # Parameter init matching the PyTorch module: randn * 0.01, zero bias.
    weight_ih = jax.random.normal(
        k_wih, (hidden_size, input_size), dtype=jnp.float32) * 0.01
    weight_hh = jax.random.normal(
        k_whh, (hidden_size, hidden_size), dtype=jnp.float32) * 0.01
    bias = jnp.zeros((hidden_size,), dtype=jnp.float32)

    # One-time repack (transpose + pack + pad) — hoisted out of the hot path.
    w_packed, b_packed, dims = prepare_rnn_params(weight_ih, weight_hh, bias)

    # --- Single step (matches RNNCell.forward) ---
    h = jax.block_until_ready(
        rnn_cell_forward(x, h_prev, w_packed, b_packed, dims))
    h_ref = _reference_cell(x, h_prev, weight_ih, weight_hh, bias)
    assert h.shape == (batch, hidden_size)
    assert jnp.allclose(h, h_ref, atol=1e-5, rtol=1e-5)

    # --- Whole sequence in one pallas_call, TT=4 timesteps per grid step ---
    # (grid=(2,): exercises the hidden-state carry across grid steps.)
    x_pad, h0_pad, meta = prepare_rnn_inputs(x_seq, h_prev, dims, time_chunk=4)
    hs = jax.block_until_ready(
        rnn_forward_sequence(x_pad, h0_pad, w_packed, b_packed, dims, meta))
    hs_ref = _reference_sequence(x_seq, h_prev, weight_ih, weight_hh, bias)
    assert hs.shape == (seq_len, batch, hidden_size)
    assert jnp.allclose(hs, hs_ref, atol=1e-5, rtol=1e-5)

    print("KERNEL_OK")
</pallas_src>

<mosaic_0001>
module attributes {stable_mosaic.version = 11 : i64} {
  func.func @_rnn_seq_kernel(%arg0: i32, %arg1: memref<1x8x128xf32, #tpu.memory_space<vmem>>, %arg2: memref<8x128xf32, #tpu.memory_space<vmem>>, %arg3: memref<256x128xf32, #tpu.memory_space<vmem>>, %arg4: memref<1x128xf32, #tpu.memory_space<vmem>>, %arg5: memref<1x8x128xf32, #tpu.memory_space<vmem>>, %arg6: memref<8x256xf32, #tpu.memory_space<vmem>>) attributes {dimension_semantics = [#tpu.dimension_semantics<arbitrary>], iteration_bounds = array<i64: 1>, scalar_prefetch = 0 : i64, scratch_operands = 1 : i64, tpu.core_type = #tpu.core_type<tc>, window_params = [{transform_indices = @transform_0, window_bounds = array<i64: 1, 8, 128>}, {pipeline_mode = #tpu.pipeline_mode<synchronous>, transform_indices = @transform_1, window_bounds = array<i64: 8, 128>}, {pipeline_mode = #tpu.pipeline_mode<synchronous>, transform_indices = @transform_2, window_bounds = array<i64: 256, 128>}, {pipeline_mode = #tpu.pipeline_mode<synchronous>, transform_indices = @transform_3, window_bounds = array<i64: 1, 128>}, {transform_indices = @transform_4, window_bounds = array<i64: 1, 8, 128>}]} {
    %c0_i32 = arith.constant 0 : i32
    %0 = arith.cmpi eq, %arg0, %c0_i32 : i32
    %1 = arith.extui %0 : i1 to i32
    %c0_i32_0 = arith.constant 0 : i32
    %2 = arith.cmpi ne, %1, %c0_i32_0 : i32
    scf.if %2 {
      %c0_14 = arith.constant 0 : index
      %c0_15 = arith.constant 0 : index
      %19 = vector.load %arg2[%c0_14, %c0_15] : memref<8x128xf32, #tpu.memory_space<vmem>>, vector<8x128xf32>
      %c0_16 = arith.constant 0 : index
      %c128_17 = arith.constant 128 : index
      %20 = vector.load %arg6[%c0_16, %c128_17] : memref<8x256xf32, #tpu.memory_space<vmem>>, vector<8x128xf32>
      tpu.vector_store %arg6[%c0_16, %c128_17], %19 {strides = array<i32>} : memref<8x256xf32, #tpu.memory_space<vmem>>, vector<8x128xf32>,
    } else {
    }
    %c0_i32_1 = arith.constant 0 : i32
    %3 = arith.index_cast %c0_i32_1 : i32 to index
    %c0 = arith.constant 0 : index
    %c0_2 = arith.constant 0 : index
    %4 = vector.load %arg1[%3, %c0, %c0_2] : memref<1x8x128xf32, #tpu.memory_space<vmem>>, vector<1x8x128xf32>
    %5 = vector.shape_cast %4 : vector<1x8x128xf32> to vector<8x128xf32>
    %c0_3 = arith.constant 0 : index
    %c0_4 = arith.constant 0 : index
    %6 = vector.load %arg6[%c0_3, %c0_4] : memref<8x256xf32, #tpu.memory_space<vmem>>, vector<8x128xf32>
    tpu.vector_store %arg6[%c0_3, %c0_4], %5 {strides = array<i32>} : memref<8x256xf32, #tpu.memory_space<vmem>>, vector<8x128xf32>,
    %c0_5 = arith.constant 0 : index
    %c0_6 = arith.constant 0 : index
    %7 = vector.load %arg6[%c0_5, %c0_6] : memref<8x256xf32, #tpu.memory_space<vmem>>, vector<8x256xf32>
    %c0_7 = arith.constant 0 : index
    %c0_8 = arith.constant 0 : index
    %8 = vector.load %arg3[%c0_7, %c0_8] : memref<256x128xf32, #tpu.memory_space<vmem>>, vector<256x128xf32>
    %cst = arith.constant dense<0.000000e+00> : vector<8x128xf32>
    %9 = tpu.matmul %7, %8, %cst {dimension_numbers = #tpu.dot_dimension_numbers<[1], [0], [0], [1], [0, 0, 1, 1], [], []>} : vector<8x256xf32>, vector<256x128xf32>, vector<8x128xf32> -> vector<8x128xf32>
    %c0_9 = arith.constant 0 : index
    %c0_10 = arith.constant 0 : index
    %10 = vector.load %arg4[%c0_9, %c0_10] : memref<1x128xf32, #tpu.memory_space<vmem>>, vector<1x128xf32>
    %11 = vector.broadcast %10 : vector<1x128xf32> to vector<8x128xf32>
    %12 = arith.addf %9, %11 : vector<8x128xf32>
    %13 = math.tanh %12 : vector<8x128xf32>
    %c0_11 = arith.constant 0 : index
    %c128 = arith.constant 128 : index
    %14 = vector.load %arg6[%c0_11, %c128] : memref<8x256xf32, #tpu.memory_space<vmem>>, vector<8x128xf32>
    tpu.vector_store %arg6[%c0_11, %c128], %13 {strides = array<i32>} : memref<8x256xf32, #tpu.memory_space<vmem>>, vector<8x128xf32>,
    %15 = arith.index_cast %c0_i32_1 : i32 to index
    %c0_12 = arith.constant 0 : index
    %c0_13 = arith.constant 0 : index
    %16 = vector.load %arg5[%15, %c0_12, %c0_13] : memref<1x8x128xf32, #tpu.memory_space<vmem>>, vector<1x8x128xf32>
    %17 = vector.shape_cast %16 : vector<1x8x128xf32> to vector<8x128xf32>
    %18 = vector.shape_cast %13 : vector<8x128xf32> to vector<1x8x128xf32>
    tpu.vector_store %arg5[%15, %c0_12, %c0_13], %18 {strides = array<i32>} : memref<1x8x128xf32, #tpu.memory_space<vmem>>, vector<1x8x128xf32>,
    %c1_i32 = arith.constant 1 : i32
    return
  }
  func.func @transform_0(%arg0: i32) -> (i32, i32, i32) {
    %c0_i32 = arith.constant 0 : i32
    %c0_i32_0 = arith.constant 0 : i32
    %c0_i32_1 = arith.constant 0 : i32
    return %arg0, %c0_i32, %c0_i32_0 : i32, i32, i32
  }
  func.func @transform_1(%arg0: i32) -> (i32, i32) {
    %c0_i32 = arith.constant 0 : i32
    %c0_i32_0 = arith.constant 0 : i32
    %c0_i32_1 = arith.constant 0 : i32
    return %c0_i32, %c0_i32_0 : i32, i32
  }
  func.func @transform_2(%arg0: i32) -> (i32, i32) {
    %c0_i32 = arith.constant 0 : i32
    %c0_i32_0 = arith.constant 0 : i32
    %c0_i32_1 = arith.constant 0 : i32
    return %c0_i32, %c0_i32_0 : i32, i32
  }
  func.func @transform_3(%arg0: i32) -> (i32, i32) {
    %c0_i32 = arith.constant 0 : i32
    %c0_i32_0 = arith.constant 0 : i32
    %c0_i32_1 = arith.constant 0 : i32
    return %c0_i32, %c0_i32_0 : i32, i32
  }
  func.func @transform_4(%arg0: i32) -> (i32, i32, i32) {
    %c0_i32 = arith.constant 0 : i32
    %c0_i32_0 = arith.constant 0 : i32
    %c0_i32_1 = arith.constant 0 : i32
    return %arg0, %c0_i32, %c0_i32_0 : i32, i32, i32
  }
}

</mosaic_0001>

<llo_original>
// kernel: tpu_custom_call.1
$region0: #{tpu_custom_call.1}
  #allocation0 [shape = 'u32[]', space=smem, size = 0x4, offset = 0x4, fixed_abs, tag = 'smem constant byte address 0x4 - core index']
  #allocation1 [shape = 'u32[144,128]{1,0:T(1,128)}', space=vmem, size = 0x12000, scoped, tag = 'internal scratch']
  #allocation2 [shape = 'f32[8,256]{1,0:T(8,128)}', space=vmem, size = 0x2000, scoped, tag = 'scratch operand']
  %s0 = inlined_call_operand.hbm [shape: f32[1,8,128], index: 0, kind: input, shape index: {}]
  %s1 = inlined_call_operand.hbm [shape: f32[8,128], index: 1, kind: input, shape index: {}]
  %s2 = inlined_call_operand.hbm [shape: f32[256,128], index: 2, kind: input, shape index: {}]
  %s3 = inlined_call_operand.vmem [shape: f32[1,128], index: 3, kind: input, shape index: {}]
  %s4 = inlined_call_operand.hbm [shape: f32[1,8,128], index: 4, kind: output, shape index: {}]
  %s5 = sld [smem:[#allocation0]]
  $region42: #{tpu_custom_call.1} parent=0
    _
  %s7 = ssub.s32 1, %s5
  %s8 = scalar_select 0, %s7, %s5
  $region1: #{tpu_custom_call.1} parent=0
    #allocation3 [shape = 'u8[4096]{0}', space=vmem, size = 0x1000, scoped, tag = 'input window, operand 0, single buffered']
    #allocation4 [shape = 's32[1]{0}', space=sflag, size = 0x4, scoped, tag = 'scoped memory for tpu_custom_call.1']
    #allocation5 [shape = 's32[1]{0}', space=sflag, size = 0x4, scoped, tag = 'scoped memory for tpu_custom_call.1']
    #allocation6 [shape = 'u8[4096]{0}', space=vmem, size = 0x1000, scoped, tag = 'input window, operand 1, single buffered']
    #allocation7 [shape = 's32[1]{0}', space=sflag, size = 0x4, scoped, tag = 'scoped memory for tpu_custom_call.1']
    #allocation8 [shape = 'u8[131072]{0}', space=vmem, size = 0x20000, scoped, tag = 'input window, operand 2, single buffered']
    #allocation9 [shape = 'u8[4096]{0}', space=vmem, size = 0x1000, scoped, tag = 'output window, operand 0, single buffered']
    %9 = vsyncpa [#allocation4], 0
    %10 = vsyncpa [#allocation7], 0
    %11 = vsyncpa [#allocation5], 0
    // Predicated region
    $region2: #{tpu_custom_call.1} parent=1 // pred_check
      _
    $region3: #{tpu_custom_call.1} parent=1 // pred_check_branch
      %13 = sbr.rel (0) target = $region5
    $region4: #{tpu_custom_call.1} parent=1 // pred_region
      %s15 = ssub.s32 128, 128
      %16 = vsyncadd [#allocation4], %s15
      %s18 = sshll.u32 [#allocation3], 4
      %s19 = int_to_ptr.vmem [resolvable:$true] %s18
      %21 = dma.hbm_to_vmem [thread:$0]  %s0, 128, %s19, [#allocation4]
    $region5: #{tpu_custom_call.1} parent=1 // pred_fallthru
      _
    // Predicated region
    $region6: #{tpu_custom_call.1} parent=1 // pred_check
      _
    $region7: #{tpu_custom_call.1} parent=1 // pred_check_branch
      %23 = sbr.rel (0) target = $region9
    $region8: #{tpu_custom_call.1} parent=1 // pred_region
      %s25 = ssub.s32 128, 128
      %26 = vsyncadd [#allocation7], %s25
      %s28 = sshll.u32 [#allocation6], 4
      %s29 = int_to_ptr.vmem [resolvable:$true] %s28
      %31 = dma.hbm_to_vmem [thread:$0]  %s1, 128, %s29, [#allocation7]
    $region9: #{tpu_custom_call.1} parent=1 // pred_fallthru
      _
    // Predicated region
    $region10: #{tpu_custom_call.1} parent=1 // pred_check
      _
    $region11: #{tpu_custom_call.1} parent=1 // pred_check_branch
      %33 = sbr.rel (0) target = $region13
    $region12: #{tpu_custom_call.1} parent=1 // pred_region
      %s35 = ssub.s32 4096, 4096
      %36 = vsyncadd [#allocation7], %s35
      %s37 = sshll.u32 [#allocation8], 4
      %s38 = int_to_ptr.vmem [resolvable:$true] %s37
      %43 = dma.hbm_to_vmem [thread:$0]  %s2, 4096, %s38, [#allocation7], 128, 128, 8
    $region13: #{tpu_custom_call.1} parent=1 // pred_fallthru
      _
    // Predicated region
    $region14: #{tpu_custom_call.1} parent=1 // pred_check
      _
    $region15: #{tpu_custom_call.1} parent=1 // pred_check_branch
      %45 = sbr.rel (0) target = $region17
    $region16: #{tpu_custom_call.1} parent=1 // pred_region
      _
    $region17: #{tpu_custom_call.1} parent=1 // pred_fallthru
      _
    // Predicated region
    $region18: #{tpu_custom_call.1} parent=1 // pred_check
      _
    $region19: #{tpu_custom_call.1} parent=1 // pred_check_branch
      %47 = sbr.rel (0) target = $region21
    $region20: #{tpu_custom_call.1} parent=1 // pred_region
      %48 = dma.done [#allocation4], 128
    $region21: #{tpu_custom_call.1} parent=1 // pred_fallthru
      _
    // Predicated region
    $region22: #{tpu_custom_call.1} parent=1 // pred_check
      _
    $region23: #{tpu_custom_call.1} parent=1 // pred_check_branch
      %50 = sbr.rel (0) target = $region25
    $region24: #{tpu_custom_call.1} parent=1 // pred_region
      %51 = dma.done [#allocation7], 128
    $region25: #{tpu_custom_call.1} parent=1 // pred_fallthru
      _
    // Predicated region
    $region26: #{tpu_custom_call.1} parent=1 // pred_check
      _
    $region27: #{tpu_custom_call.1} parent=1 // pred_check_branch
      %53 = sbr.rel (0) target = $region29
    $region28: #{tpu_custom_call.1} parent=1 // pred_region
      %54 = dma.done [#allocation7], 4096
    $region29: #{tpu_custom_call.1} parent=1 // pred_fallthru
      _
    %p55 = scmp.eq.s32.totalorder 0, 0
    // Predicated region
    $region30: #{tpu_custom_call.1} parent=1 // pred_check
      %p56 = pneg %p55
    $region31: #{tpu_custom_call.1} parent=1 // pred_check_branch
      %58 = sbr.rel (%p56) target = $region33
    $region32: #{tpu_custom_call.1} parent=1 // pred_region
      %v59 = vld [vmem:[#allocation6] sm:$0xff]
      %60 = vst [vmem:[#allocation2 + $0x8] sm:$0xff] %v59
    $region33: #{tpu_custom_call.1} parent=1 // pred_fallthru
      _
    %v61 = vld [vmem:[#allocation3] sm:$0xff]
    %62 = vst [vmem:[#allocation2] sm:$0xff] %v61
    %v63 = vld [vmem:[#allocation2] sm:$0xff]
    %v64 = vld [vmem:[#allocation2 + $0x8] sm:$0xff]
    %v65 = vld [vmem:[#allocation8] sm:$0xff]
    %v66 = vld [vmem:[#allocation8 + $0x8] sm:$0xff]
    %v67 = vld [vmem:[#allocation8 + $0x10] sm:$0xff]
    %v68 = vld [vmem:[#allocation8 + $0x18] sm:$0xff]
    %v69 = vld [vmem:[#allocation8 + $0x20] sm:$0xff]
    %v70 = vld [vmem:[#allocation8 + $0x28] sm:$0xff]
    %v71 = vld [vmem:[#allocation8 + $0x30] sm:$0xff]
    %v72 = vld [vmem:[#allocation8 + $0x38] sm:$0xff]
    %v73 = vld [vmem:[#allocation8 + $0x40] sm:$0xff]
    %v74 = vld [vmem:[#allocation8 + $0x48] sm:$0xff]
    %v75 = vld [vmem:[#allocation8 + $0x50] sm:$0xff]
    %v76 = vld [vmem:[#allocation8 + $0x58] sm:$0xff]
    %v77 = vld [vmem:[#allocation8 + $0x60] sm:$0xff]
    %v78 = vld [vmem:[#allocation8 + $0x68] sm:$0xff]
    %v79 = vld [vmem:[#allocation8 + $0x70] sm:$0xff]
    %v80 = vld [vmem:[#allocation8 + $0x78] sm:$0xff]
    %v81 = vld [vmem:[#allocation8 + $0x80] sm:$0xff]
    %v82 = vld [vmem:[#allocation8 + $0x88] sm:$0xff]
    %v83 = vld [vmem:[#allocation8 + $0x90] sm:$0xff]
    %v84 = vld [vmem:[#allocation8 + $0x98] sm:$0xff]
    %v85 = vld [vmem:[#allocation8 + $0xa0] sm:$0xff]
    %v86 = vld [vmem:[#allocation8 + $0xa8] sm:$0xff]
    %v87 = vld [vmem:[#allocation8 + $0xb0] sm:$0xff]
    %v88 = vld [vmem:[#allocation8 + $0xb8] sm:$0xff]
    %v89 = vld [vmem:[#allocation8 + $0xc0] sm:$0xff]
    %v90 = vld [vmem:[#allocation8 + $0xc8] sm:$0xff]
    %v91 = vld [vmem:[#allocation8 + $0xd0] sm:$0xff]
    %v92 = vld [vmem:[#allocation8 + $0xd8] sm:$0xff]
    %v93 = vld [vmem:[#allocation8 + $0xe0] sm:$0xff]
    %v94 = vld [vmem:[#allocation8 + $0xe8] sm:$0xff]
    %v95 = vld [vmem:[#allocation8 + $0xf0] sm:$0xff]
    %v96 = vld [vmem:[#allocation8 + $0xf8] sm:$0xff]
    %v97 = vld [vmem:[%s3] sm:$0x1]
    %v99 = vlaneseq
    %v100 = vshrl.u32 %v99, 7
    %v101 = vsub.s32 0, %v100
    %v102 = vrot.slane %v97, %v101
    %104 = vmatprep.subr.mxu0 0.0
    %105 = vmatpush1.msra.mxu0 %v80
    %106 = vmatprep.subr.mxu0 0.0
    %107 = vmatpush1.msra.mxu0 %v79
    %108 = vmatprep.subr.mxu0 0.0
    %109 = vmatpush1.msra.mxu0 %v78
    %110 = vmatprep.subr.mxu0 0.0
    %111 = vmatpush1.msra.mxu0 %v77
    %112 = vmatprep.subr.mxu0 0.0
    %113 = vmatpush1.msra.mxu0 %v76
    %114 = vmatprep.subr.mxu0 0.0
    %115 = vmatpush1.msra.mxu0 %v75
    %116 = vmatprep.subr.mxu0 0.0
    %117 = vmatpush1.msra.mxu0 %v74
    %118 = vmatprep.subr.mxu0 0.0
    %119 = vmatpush1.msra.mxu0 %v73
    %120 = vmatprep.subr.mxu0 0.0
    %121 = vmatpush1.msra.mxu0 %v72
    %122 = vmatprep.subr.mxu0 0.0
    %123 = vmatpush1.msra.mxu0 %v71
    %124 = vmatprep.subr.mxu0 0.0
    %125 = vmatpush1.msra.mxu0 %v70
    %126 = vmatprep.subr.mxu0 0.0
    %127 = vmatpush1.msra.mxu0 %v69
    %128 = vmatprep.subr.mxu0 0.0
    %129 = vmatpush1.msra.mxu0 %v68
    %130 = vmatprep.subr.mxu0 0.0
    %131 = vmatpush1.msra.mxu0 %v67
    %132 = vmatprep.subr.mxu0 0.0
    %133 = vmatpush1.msra.mxu0 %v66
    %134 = vmatprep.subr.mxu0 0.0
    %135 = vmatpush1.msra.mxu0 %v65
    %136 = vmatprep.subr.mxu0 0.0
    %137 = vmatpush2.msra.mxu0 %v96
    %138 = vmatprep.subr.mxu0 0.0
    %139 = vmatpush2.msra.mxu0 %v95
    %140 = vmatprep.subr.mxu0 0.0
    %141 = vmatpush2.msra.mxu0 %v94
    %142 = vmatprep.subr.mxu0 0.0
    %143 = vmatpush2.msra.mxu0 %v93
    %144 = vmatprep.subr.mxu0 0.0
    %145 = vmatpush2.msra.mxu0 %v92
    %146 = vmatprep.subr.mxu0 0.0
    %147 = vmatpush2.msra.mxu0 %v91
    %148 = vmatprep.subr.mxu0 0.0
    %149 = vmatpush2.msra.mxu0 %v90
    %150 = vmatprep.subr.mxu0 0.0
    %151 = vmatpush2.msra.mxu0 %v89
    %152 = vmatprep.subr.mxu0 0.0
    %153 = vmatpush2.msra.mxu0 %v88
    %154 = vmatprep.subr.mxu0 0.0
    %155 = vmatpush2.msra.mxu0 %v87
    %156 = vmatprep.subr.mxu0 0.0
    %157 = vmatpush2.msra.mxu0 %v86
    %158 = vmatprep.subr.mxu0 0.0
    %159 = vmatpush2.msra.mxu0 %v85
    %160 = vmatprep.subr.mxu0 0.0
    %161 = vmatpush2.msra.mxu0 %v84
    %162 = vmatprep.subr.mxu0 0.0
    %163 = vmatpush2.msra.mxu0 %v83
    %164 = vmatprep.subr.mxu0 0.0
    %165 = vmatpush2.msra.mxu0 %v82
    %166 = vmatprep.subr.mxu0 0.0
    %167 = vmatpush2.msra.mxu0 %v81
    %168 = vmatprep.mubr.f32.mxu0 %v64
    %169 = vmatmul.mubr.f32.gmra.mxu0 %v63
    %v170 = vpop.f32.mrf.mxu0
    %v171 = vadd.f32 %v102, %v170
    %v172 = vpop.f32.mrf.mxu0
    %173 = vdwg.mxu0
    %v174 = vtanh.pop %v171
    %175 = vst [vmem:[#allocation2 + $0x8] sm:$0xff] %v174
    %176 = vst [vmem:[#allocation9] sm:$0xff] %v174
    // Predicated region
    $region34: #{tpu_custom_call.1} parent=1 // pred_check
      _
    $region35: #{tpu_custom_call.1} parent=1 // pred_check_branch
      %178 = sbr.rel (0) target = $region37
    $region36: #{tpu_custom_call.1} parent=1 // pred_region
      %s180 = ssub.s32 128, 128
      %181 = vsyncadd [#allocation5], %s180
      %s183 = sshll.u32 [#allocation9], 4
      %s184 = int_to_ptr.vmem [resolvable:$true] %s183
      %186 = dma.vmem_to_hbm [thread:$0]  %s184, 128, %s4, [#allocation5]
    $region37: #{tpu_custom_call.1} parent=1 // pred_fallthru
      _
    // Predicated region
    $region38: #{tpu_custom_call.1} parent=1 // pred_check
      _
    $region39: #{tpu_custom_call.1} parent=1 // pred_check_branch
      %188 = sbr.rel (0) target = $region41
    $region40: #{tpu_custom_call.1} parent=1 // pred_region
      %189 = dma.done [#allocation5], 128
    $region41: #{tpu_custom_call.1} parent=1 // pred_fallthru
      _
    %190 = vsyncpa [#allocation4], 1
    %191 = vsyncpa [#allocation7], 1
    %192 = vsyncpa [#allocation5], 1

</llo_original>
